<compile_context>
chip_gen: v5e
topology: v5e:2x2
jax: 0.10.0
libtpu: 0.0.40
codegen_flags: <defaults>
</compile_context>

<pallas_src>
import functools

import jax
import jax.numpy as jnp
from jax.experimental import pallas as pl
from jax.experimental.pallas import tpu as pltpu

_LANE = 128
_SUBLANE = 8


def _round_up(n, m):
    return ((n + m - 1) // m) * m


def mlp_kernel(x_ref, w1_ref, b1_ref, w2_ref, b2_ref, o_ref):
    # x_ref: (TB, 784) f32 ; w1_ref: (784, H_p) bf16 ; b1_ref: (1, H_p) f32
    # w2_ref: (H_p, Dout_p) bf16 ; b2_ref: (1, Dout_p) f32 ; o_ref: (TB, Dout_p) bf16
    x = x_ref[...].astype(w1_ref.dtype)                       # in-kernel cast, hidden under DMA
    h = jnp.dot(x, w1_ref[...], preferred_element_type=jnp.float32)
    h = jnp.maximum(h + b1_ref[...], 0.0)                     # bias + ReLU in f32 (VPU)
    o = jnp.dot(h.astype(w2_ref.dtype), w2_ref[...],
                preferred_element_type=jnp.float32)
    o_ref[...] = (o + b2_ref[...]).astype(o_ref.dtype)


def prepare_params(w1, b1, w2, b2, compute_dtype=jnp.bfloat16):
    """Pad/cast weights once (outside the per-call forward path).
    w1:(784,64) b1:(64,)/(1,64) w2:(64,10) b2:(10,)/(1,10) -> lane-dense padded params."""
    d_in, hid = w1.shape
    d_out = w2.shape[1]
    hid_p = _round_up(hid, _LANE)       # 64  -> 128
    d_out_p = _round_up(d_out, _LANE)   # 10  -> 128
    w1_p = jnp.zeros((d_in, hid_p), compute_dtype).at[:, :hid].set(
        w1.astype(compute_dtype))
    b1_p = jnp.zeros((1, hid_p), jnp.float32).at[:, :hid].set(
        b1.astype(jnp.float32).reshape(1, hid))
    w2_p = jnp.zeros((hid_p, d_out_p), compute_dtype).at[:hid, :d_out].set(
        w2.astype(compute_dtype))
    b2_p = jnp.zeros((1, d_out_p), jnp.float32).at[:, :d_out].set(
        b2.astype(jnp.float32).reshape(1, d_out))
    return w1_p, b1_p, w2_p, b2_p, d_out


@functools.partial(jax.jit, static_argnames=("d_out", "block_b"))
def baseline_b_forward(x_nchw, w1_p, b1_p, w2_p, b2_p, *, d_out=10, block_b=1024):
    """x_nchw: (B, C, H, W) f32 with C*H*W == w1_p.shape[0]. Returns (B, d_out) f32."""
    B = x_nchw.shape[0]
    x_flat = x_nchw.reshape(B, -1).astype(jnp.float32)         # torch .view(B, -1)
    d_in = x_flat.shape[1]
    hid_p = w1_p.shape[1]
    d_out_p = w2_p.shape[1]
    assert w1_p.shape[0] == d_in, "flattened input dim must match fc1 input dim"

    # Batch tile: multiple of 8 sublanes; >=2 grid steps when B allows (both v7x TCs),
    # capped at block_b (default 1024) to stay well inside v5e's 16 MiB scoped VMEM.
    if B <= _SUBLANE:
        tb = B                                                  # full dim: (8,128) rule satisfied
    else:
        tb = max(_SUBLANE, min(block_b, _round_up(pl.cdiv(B, 2), _SUBLANE)))
    grid_b = pl.cdiv(B, tb)                                     # partial last block is fine:
                                                                # OOB rows are garbage but their
                                                                # output writes are discarded.

    cost = pl.CostEstimate(
        flops=2 * B * d_in * hid_p + 2 * B * hid_p * d_out_p,
        transcendentals=0,
        bytes_accessed=int(B * d_in * 4                          # x streamed, f32
                           + (d_in * hid_p + hid_p * d_out_p) * 2  # bf16 weights (read once)
                           + (hid_p + d_out_p) * 4                 # f32 biases
                           + B * d_out_p * 2))                     # bf16 output writeback

    out_p = pl.pallas_call(
        mlp_kernel,
        out_shape=jax.ShapeDtypeStruct((B, d_out_p), jnp.bfloat16),
        grid=(grid_b,),
        in_specs=[
            pl.BlockSpec((tb, d_in), lambda i: (i, 0)),          # x: streamed over batch
            pl.BlockSpec((d_in, hid_p), lambda i: (0, 0)),       # w1: grid-invariant (resident)
            pl.BlockSpec((1, hid_p), lambda i: (0, 0)),          # b1: resident
            pl.BlockSpec((hid_p, d_out_p), lambda i: (0, 0)),    # w2: resident
            pl.BlockSpec((1, d_out_p), lambda i: (0, 0)),        # b2: resident
        ],
        out_specs=pl.BlockSpec((tb, d_out_p), lambda i: (i, 0)),
        compiler_params=pltpu.CompilerParams(
            dimension_semantics=("parallel",)),                  # v7x: shard batch across 2 TCs
        cost_estimate=cost,
    )(x_flat, w1_p, b1_p, w2_p, b2_p)

    return out_p[:, :d_out].astype(jnp.float32)


def init_params(key, input_dim=784, hidden_dim=64, output_dim=10):
    """Deterministic init mimicking nn.Linear's U(-1/sqrt(fan_in), 1/sqrt(fan_in)).
    Weights stored as (in, out): kernel computes x @ W == torch's x @ W_t.T."""
    k1, k2, k3, k4 = jax.random.split(key, 4)
    bound1 = 1.0 / (input_dim ** 0.5)
    bound2 = 1.0 / (hidden_dim ** 0.5)
    w1 = jax.random.uniform(k1, (input_dim, hidden_dim), jnp.float32, -bound1, bound1)
    b1 = jax.random.uniform(k2, (1, hidden_dim), jnp.float32, -bound1, bound1)
    w2 = jax.random.uniform(k3, (hidden_dim, output_dim), jnp.float32, -bound2, bound2)
    b2 = jax.random.uniform(k4, (1, output_dim), jnp.float32, -bound2, bound2)
    return w1, b1, w2, b2


def _reference(x, w1, b1, w2, b2):
    """Pure-JAX references: f32 baseline and bf16-input/f32-accum (kernel precision)."""
    x_flat = x.reshape(x.shape[0], -1)
    ref_f32 = jnp.maximum(x_flat @ w1 + b1, 0.0) @ w2 + b2
    h_bf = jnp.dot(x_flat.astype(jnp.bfloat16), w1.astype(jnp.bfloat16),
                   preferred_element_type=jnp.float32) + b1
    h_bf = jnp.maximum(h_bf, 0.0)
    ref_bf = jnp.dot(h_bf.astype(jnp.bfloat16), w2.astype(jnp.bfloat16),
                     preferred_element_type=jnp.float32) + b2
    return ref_f32, ref_bf


if __name__ == "__main__":
    key = jax.random.PRNGKey(0)
    k_x, k_x2, k_p = jax.random.split(key, 3)

    # Inputs consistent with input_dim=784: C*H*W = 4*14*14 = 784.
    w1, b1, w2, b2 = init_params(k_p, input_dim=784, hidden_dim=64, output_dim=10)
    w1_p, b1_p, w2_p, b2_p, d_out = prepare_params(w1, b1, w2, b2)

    # Case 1: tiny batch (single full-dim block).
    x = jax.random.normal(k_x, (2, 4, 14, 14), dtype=jnp.float32)
    out = jax.block_until_ready(baseline_b_forward(x, w1_p, b1_p, w2_p, b2_p, d_out=d_out))
    ref_f32, ref_bf = _reference(x, w1, b1, w2, b2)
    assert out.shape == (2, 10)
    assert jnp.allclose(out, ref_bf, atol=5e-3, rtol=1e-2), "mismatch vs bf16 reference (B=2)"
    assert jnp.allclose(out, ref_f32, atol=5e-2, rtol=5e-2), "mismatch vs f32 reference (B=2)"

    # Case 2: batch not a multiple of the tile -> exercises the >1-step grid with a
    # partial last block (garbage rows discarded on write).
    x2 = jax.random.normal(k_x2, (20, 4, 14, 14), dtype=jnp.float32)
    out2 = jax.block_until_ready(baseline_b_forward(x2, w1_p, b1_p, w2_p, b2_p, d_out=d_out))
    ref2_f32, ref2_bf = _reference(x2, w1, b1, w2, b2)
    assert out2.shape == (20, 10)
    assert jnp.allclose(out2, ref2_bf, atol=5e-3, rtol=1e-2), "mismatch vs bf16 reference (B=20)"
    assert jnp.allclose(out2, ref2_f32, atol=5e-2, rtol=5e-2), "mismatch vs f32 reference (B=20)"

    print("KERNEL_OK")
</pallas_src>

<mosaic_0001>
module attributes {stable_mosaic.version = 11 : i64} {
  func.func @mlp_kernel(%arg0: i32, %arg1: memref<2x784xf32, #tpu.memory_space<vmem>>, %arg2: memref<784x128xbf16, #tpu.memory_space<vmem>>, %arg3: memref<1x128xf32, #tpu.memory_space<vmem>>, %arg4: memref<128x128xbf16, #tpu.memory_space<vmem>>, %arg5: memref<1x128xf32, #tpu.memory_space<vmem>>, %arg6: memref<2x128xbf16, #tpu.memory_space<vmem>>) attributes {dimension_semantics = [#tpu.dimension_semantics<parallel>], iteration_bounds = array<i64: 1>, scalar_prefetch = 0 : i64, scratch_operands = 0 : i64, tpu.core_type = #tpu.core_type<tc>, window_params = [{transform_indices = @transform_0, window_bounds = array<i64: 2, 784>}, {pipeline_mode = #tpu.pipeline_mode<synchronous>, transform_indices = @transform_1, window_bounds = array<i64: 784, 128>}, {pipeline_mode = #tpu.pipeline_mode<synchronous>, transform_indices = @transform_2, window_bounds = array<i64: 1, 128>}, {pipeline_mode = #tpu.pipeline_mode<synchronous>, transform_indices = @transform_3, window_bounds = array<i64: 128, 128>}, {pipeline_mode = #tpu.pipeline_mode<synchronous>, transform_indices = @transform_4, window_bounds = array<i64: 1, 128>}, {transform_indices = @transform_5, window_bounds = array<i64: 2, 128>}]} {
    %c0 = arith.constant 0 : index
    %c0_0 = arith.constant 0 : index
    %0 = vector.load %arg1[%c0, %c0_0] : memref<2x784xf32, #tpu.memory_space<vmem>>, vector<2x784xf32>
    %1 = arith.truncf %0 : vector<2x784xf32> to vector<2x784xbf16>
    %c0_1 = arith.constant 0 : index
    %c0_2 = arith.constant 0 : index
    %2 = vector.load %arg2[%c0_1, %c0_2] : memref<784x128xbf16, #tpu.memory_space<vmem>>, vector<784x128xbf16>
    %cst = arith.constant dense<0.000000e+00> : vector<2x128xf32>
    %3 = tpu.matmul %1, %2, %cst {dimension_numbers = #tpu.dot_dimension_numbers<[1], [0], [0], [1], [0, 0, 1, 1], [], []>} : vector<2x784xbf16>, vector<784x128xbf16>, vector<2x128xf32> -> vector<2x128xf32>
    %c0_3 = arith.constant 0 : index
    %c0_4 = arith.constant 0 : index
    %4 = vector.load %arg3[%c0_3, %c0_4] : memref<1x128xf32, #tpu.memory_space<vmem>>, vector<1x128xf32>
    %5 = vector.broadcast %4 : vector<1x128xf32> to vector<2x128xf32>
    %6 = arith.addf %3, %5 : vector<2x128xf32>
    %cst_5 = arith.constant 0.000000e+00 : f32
    %7 = vector.broadcast %cst_5 : f32 to vector<2x128xf32>
    %8 = arith.maximumf %6, %7 : vector<2x128xf32>
    %9 = arith.truncf %8 : vector<2x128xf32> to vector<2x128xbf16>
    %c0_6 = arith.constant 0 : index
    %c0_7 = arith.constant 0 : index
    %10 = vector.load %arg4[%c0_6, %c0_7] : memref<128x128xbf16, #tpu.memory_space<vmem>>, vector<128x128xbf16>
    %cst_8 = arith.constant dense<0.000000e+00> : vector<2x128xf32>
    %11 = tpu.matmul %9, %10, %cst_8 {dimension_numbers = #tpu.dot_dimension_numbers<[1], [0], [0], [1], [0, 0, 1, 1], [], []>} : vector<2x128xbf16>, vector<128x128xbf16>, vector<2x128xf32> -> vector<2x128xf32>
    %c0_9 = arith.constant 0 : index
    %c0_10 = arith.constant 0 : index
    %12 = vector.load %arg5[%c0_9, %c0_10] : memref<1x128xf32, #tpu.memory_space<vmem>>, vector<1x128xf32>
    %13 = vector.broadcast %12 : vector<1x128xf32> to vector<2x128xf32>
    %14 = arith.addf %11, %13 : vector<2x128xf32>
    %15 = arith.truncf %14 : vector<2x128xf32> to vector<2x128xbf16>
    %c0_11 = arith.constant 0 : index
    %c0_12 = arith.constant 0 : index
    %16 = vector.load %arg6[%c0_11, %c0_12] : memref<2x128xbf16, #tpu.memory_space<vmem>>, vector<2x128xbf16>
    tpu.vector_store %arg6[%c0_11, %c0_12], %15 {strides = array<i32>} : memref<2x128xbf16, #tpu.memory_space<vmem>>, vector<2x128xbf16>,
    return
  }
  func.func @transform_0(%arg0: i32) -> (i32, i32) {
    %c0_i32 = arith.constant 0 : i32
    %c0_i32_0 = arith.constant 0 : i32
    return %arg0, %c0_i32 : i32, i32
  }
  func.func @transform_1(%arg0: i32) -> (i32, i32) {
    %c0_i32 = arith.constant 0 : i32
    %c0_i32_0 = arith.constant 0 : i32
    %c0_i32_1 = arith.constant 0 : i32
    return %c0_i32, %c0_i32_0 : i32, i32
  }
  func.func @transform_2(%arg0: i32) -> (i32, i32) {
    %c0_i32 = arith.constant 0 : i32
    %c0_i32_0 = arith.constant 0 : i32
    %c0_i32_1 = arith.constant 0 : i32
    return %c0_i32, %c0_i32_0 : i32, i32
  }
  func.func @transform_3(%arg0: i32) -> (i32, i32) {
    %c0_i32 = arith.constant 0 : i32
    %c0_i32_0 = arith.constant 0 : i32
    %c0_i32_1 = arith.constant 0 : i32
    return %c0_i32, %c0_i32_0 : i32, i32
  }
  func.func @transform_4(%arg0: i32) -> (i32, i32) {
    %c0_i32 = arith.constant 0 : i32
    %c0_i32_0 = arith.constant 0 : i32
    %c0_i32_1 = arith.constant 0 : i32
    return %c0_i32, %c0_i32_0 : i32, i32
  }
  func.func @transform_5(%arg0: i32) -> (i32, i32) {
    %c0_i32 = arith.constant 0 : i32
    %c0_i32_0 = arith.constant 0 : i32
    return %arg0, %c0_i32 : i32, i32
  }
}

</mosaic_0001>

<llo_original>
// kernel: baseline_b_forward.1
$region0: #{baseline_b_forward.1}
  #allocation0 [shape = 'u32[]', space=smem, size = 0x4, offset = 0x4, fixed_abs, tag = 'smem constant byte address 0x4 - core index']
  #allocation1 [shape = 'u32[72,128]{1,0:T(1,128)}', space=vmem, size = 0x9000, scoped, tag = 'internal scratch']
  %s0 = inlined_call_operand.vmem [shape: f32[2,784], index: 0, kind: input, shape index: {}]
  %s1 = inlined_call_operand.hbm [shape: bf16[784,128], index: 1, kind: input, shape index: {}]
  %s2 = inlined_call_operand.vmem [shape: f32[1,128], index: 2, kind: input, shape index: {}]
  %s3 = inlined_call_operand.vmem [shape: bf16[128,128], index: 3, kind: input, shape index: {}]
  %s4 = inlined_call_operand.vmem [shape: f32[1,128], index: 4, kind: input, shape index: {}]
  %s5 = inlined_call_operand.vmem [shape: bf16[2,128], index: 5, kind: output, shape index: {}]
  %s6 = sld [smem:[#allocation0]]
  $region34: #{baseline_b_forward.1} parent=0
    _
  %s8 = ssub.s32 1, %s6
  %s9 = scalar_select 0, %s8, %s6
  $region1: #{baseline_b_forward.1} parent=0
    #allocation2 [shape = 'u8[200704]{0}', space=vmem, size = 0x31000, scoped, tag = 'input window, operand 1, single buffered']
    #allocation3 [shape = 's32[1]{0}', space=sflag, size = 0x4, scoped, tag = 'scoped memory for baseline_b_forward.1']
    %10 = vsyncpa [#allocation3], 0
    // Predicated region
    $region2: #{baseline_b_forward.1} parent=1 // pred_check
      _
    $region3: #{baseline_b_forward.1} parent=1 // pred_check_branch
      %12 = sbr.rel (0) target = $region5
    $region4: #{baseline_b_forward.1} parent=1 // pred_region
      _
    $region5: #{baseline_b_forward.1} parent=1 // pred_fallthru
      _
    // Predicated region
    $region6: #{baseline_b_forward.1} parent=1 // pred_check
      _
    $region7: #{baseline_b_forward.1} parent=1 // pred_check_branch
      %14 = sbr.rel (0) target = $region9
    $region8: #{baseline_b_forward.1} parent=1 // pred_region
      %16 = vsyncadd [#allocation3], 0
      %s17 = sshll.u32 %s1, 4
      %s18 = int_to_ptr.hbm [resolvable:$true] %s17
      %s19 = sshll.u32 [#allocation2], 4
      %s20 = int_to_ptr.vmem [resolvable:$true] %s19
      %25 = dma.hbm_to_vmem [thread:$0]  %s18, 6272, %s20, [#allocation3], 64, 64, 4
    $region9: #{baseline_b_forward.1} parent=1 // pred_fallthru
      _
    // Predicated region
    $region10: #{baseline_b_forward.1} parent=1 // pred_check
      _
    $region11: #{baseline_b_forward.1} parent=1 // pred_check_branch
      %27 = sbr.rel (0) target = $region13
    $region12: #{baseline_b_forward.1} parent=1 // pred_region
      _
    $region13: #{baseline_b_forward.1} parent=1 // pred_fallthru
      _
    // Predicated region
    $region14: #{baseline_b_forward.1} parent=1 // pred_check
      _
    $region15: #{baseline_b_forward.1} parent=1 // pred_check_branch
      %29 = sbr.rel (0) target = $region17
    $region16: #{baseline_b_forward.1} parent=1 // pred_region
      _
    $region17: #{baseline_b_forward.1} parent=1 // pred_fallthru
      _
    // Predicated region
    $region18: #{baseline_b_forward.1} parent=1 // pred_check
      _
    $region19: #{baseline_b_forward.1} parent=1 // pred_check_branch
      %31 = sbr.rel (0) target = $region21
    $region20: #{baseline_b_forward.1} parent=1 // pred_region
      _
    $region21: #{baseline_b_forward.1} parent=1 // pred_fallthru
      _
    // Predicated region
    $region22: #{baseline_b_forward.1} parent=1 // pred_check
      _
    $region23: #{baseline_b_forward.1} parent=1 // pred_check_branch
      %33 = sbr.rel (0) target = $region25
    $region24: #{baseline_b_forward.1} parent=1 // pred_region
      %35 = dma.done [#allocation3], 6272
    $region25: #{baseline_b_forward.1} parent=1 // pred_fallthru
      _
    %v37 = vld [vmem:[%s0] sm:$0xff]
    %v38 = vld [vmem:[%s0 + $0x8] sm:$0x3f]
    %41 = vst [vmem:[#allocation1] ss:$4 sm:$0xff] %v37
    %s42 = scalar_lea.vmem [#allocation1], 32
    %43 = vst [vmem:[%s42] ss:$4 sm:$0xff] %v38
    %v44 = vld.sshfl [vmem:[#allocation1] sm:$0xff pattern:$0x73625140]
    %v45 = vld.sshfl [vmem:[#allocation1 + $0x8] sm:$0xff pattern:$0x73625140]
    %v46 = vld.sshfl [vmem:[#allocation1 + $0x10] sm:$0xff pattern:$0x73625140]
    %v47 = vld.sshfl [vmem:[#allocation1 + $0x18] sm:$0xff pattern:$0x73625140]
    %v48 = vld.sshfl [vmem:[#allocation1 + $0x20] sm:$0xff pattern:$0x73625140]
    %v49 = vld.sshfl [vmem:[#allocation1 + $0x28] sm:$0xff pattern:$0x73625140]
    %v50 = vld.sshfl [vmem:[#allocation1 + $0x30] sm:$0xff pattern:$0x73625140]
    %v58 = vpack.c.bf16 %v44, %v44
    %v59 = vpack.c.bf16 %v45, %v45
    %v60 = vpack.c.bf16 %v46, %v46
    %v61 = vpack.c.bf16 %v47, %v47
    %v62 = vpack.c.bf16 %v48, %v48
    %v63 = vpack.c.bf16 %v49, %v49
    %v64 = vpack.c.bf16 %v50, %v50
    %v65 = vld [vmem:[#allocation2] sm:$0xf]
    %v66 = vld [vmem:[#allocation2 + $0x4] sm:$0xf]
    %v67 = vld [vmem:[#allocation2 + $0x8] sm:$0xf]
    %v68 = vld [vmem:[#allocation2 + $0xc] sm:$0xf]
    %v69 = vld [vmem:[#allocation2 + $0x10] sm:$0xf]
    %v70 = vld [vmem:[#allocation2 + $0x14] sm:$0xf]
    %v71 = vld [vmem:[#allocation2 + $0x18] sm:$0xf]
    %v72 = vld [vmem:[#allocation2 + $0x1c] sm:$0xf]
    %v73 = vld [vmem:[#allocation2 + $0x20] sm:$0xf]
    %v74 = vld [vmem:[#allocation2 + $0x24] sm:$0xf]
    %v75 = vld [vmem:[#allocation2 + $0x28] sm:$0xf]
    %v76 = vld [vmem:[#allocation2 + $0x2c] sm:$0xf]
    %v77 = vld [vmem:[#allocation2 + $0x30] sm:$0xf]
    %v78 = vld [vmem:[#allocation2 + $0x34] sm:$0xf]
    %v79 = vld [vmem:[#allocation2 + $0x38] sm:$0xf]
    %v80 = vld [vmem:[#allocation2 + $0x3c] sm:$0xf]
    %v81 = vld [vmem:[#allocation2 + $0x40] sm:$0xf]
    %v82 = vld [vmem:[#allocation2 + $0x44] sm:$0xf]
    %v83 = vld [vmem:[#allocation2 + $0x48] sm:$0xf]
    %v84 = vld [vmem:[#allocation2 + $0x4c] sm:$0xf]
    %v85 = vld [vmem:[#allocation2 + $0x50] sm:$0xf]
    %v86 = vld [vmem:[#allocation2 + $0x54] sm:$0xf]
    %v87 = vld [vmem:[#allocation2 + $0x58] sm:$0xf]
    %v88 = vld [vmem:[#allocation2 + $0x5c] sm:$0xf]
    %v89 = vld [vmem:[#allocation2 + $0x60] sm:$0xf]
    %v90 = vld [vmem:[#allocation2 + $0x64] sm:$0xf]
    %v91 = vld [vmem:[#allocation2 + $0x68] sm:$0xf]
    %v92 = vld [vmem:[#allocation2 + $0x6c] sm:$0xf]
    %v93 = vld [vmem:[#allocation2 + $0x70] sm:$0xf]
    %v94 = vld [vmem:[#allocation2 + $0x74] sm:$0xf]
    %v95 = vld [vmem:[#allocation2 + $0x78] sm:$0xf]
    %v96 = vld [vmem:[#allocation2 + $0x7c] sm:$0xf]
    %v97 = vld [vmem:[#allocation2 + $0x80] sm:$0xf]
    %v98 = vld [vmem:[#allocation2 + $0x84] sm:$0xf]
    %v99 = vld [vmem:[#allocation2 + $0x88] sm:$0xf]
    %v100 = vld [vmem:[#allocation2 + $0x8c] sm:$0xf]
    %v101 = vld [vmem:[#allocation2 + $0x90] sm:$0xf]
    %v102 = vld [vmem:[#allocation2 + $0x94] sm:$0xf]
    %v103 = vld [vmem:[#allocation2 + $0x98] sm:$0xf]
    %v104 = vld [vmem:[#allocation2 + $0x9c] sm:$0xf]
    %v105 = vld [vmem:[#allocation2 + $0xa0] sm:$0xf]
    %v106 = vld [vmem:[#allocation2 + $0xa4] sm:$0xf]
    %v107 = vld [vmem:[#allocation2 + $0xa8] sm:$0xf]
    %v108 = vld [vmem:[#allocation2 + $0xac] sm:$0xf]
    %v109 = vld [vmem:[#allocation2 + $0xb0] sm:$0xf]
    %v110 = vld [vmem:[#allocation2 + $0xb4] sm:$0xf]
    %v111 = vld [vmem:[#allocation2 + $0xb8] sm:$0xf]
    %v112 = vld [vmem:[#allocation2 + $0xbc] sm:$0xf]
    %v113 = vld [vmem:[#allocation2 + $0xc0] sm:$0xf]
    %v114 = vld [vmem:[#allocation2 + $0xc4] sm:$0xf]
    %v115 = vld [vmem:[#allocation2 + $0xc8] sm:$0xf]
    %v116 = vld [vmem:[#allocation2 + $0xcc] sm:$0xf]
    %v117 = vld [vmem:[#allocation2 + $0xd0] sm:$0xf]
    %v118 = vld [vmem:[#allocation2 + $0xd4] sm:$0xf]
    %v119 = vld [vmem:[#allocation2 + $0xd8] sm:$0xf]
    %v120 = vld [vmem:[#allocation2 + $0xdc] sm:$0xf]
    %v121 = vld [vmem:[#allocation2 + $0xe0] sm:$0xf]
    %v122 = vld [vmem:[#allocation2 + $0xe4] sm:$0xf]
    %v123 = vld [vmem:[#allocation2 + $0xe8] sm:$0xf]
    %v124 = vld [vmem:[#allocation2 + $0xec] sm:$0xf]
    %v125 = vld [vmem:[#allocation2 + $0xf0] sm:$0xf]
    %v126 = vld [vmem:[#allocation2 + $0xf4] sm:$0xf]
    %v127 = vld [vmem:[#allocation2 + $0xf8] sm:$0xf]
    %v128 = vld [vmem:[#allocation2 + $0xfc] sm:$0xf]
    %v129 = vld [vmem:[#allocation2 + $0x100] sm:$0xf]
    %v130 = vld [vmem:[#allocation2 + $0x104] sm:$0xf]
    %v131 = vld [vmem:[#allocation2 + $0x108] sm:$0xf]
    %v132 = vld [vmem:[#allocation2 + $0x10c] sm:$0xf]
    %v133 = vld [vmem:[#allocation2 + $0x110] sm:$0xf]
    %v134 = vld [vmem:[#allocation2 + $0x114] sm:$0xf]
    %v135 = vld [vmem:[#allocation2 + $0x118] sm:$0xf]
    %v136 = vld [vmem:[#allocation2 + $0x11c] sm:$0xf]
    %v137 = vld [vmem:[#allocation2 + $0x120] sm:$0xf]
    %v138 = vld [vmem:[#allocation2 + $0x124] sm:$0xf]
    %v139 = vld [vmem:[#allocation2 + $0x128] sm:$0xf]
    %v140 = vld [vmem:[#allocation2 + $0x12c] sm:$0xf]
    %v141 = vld [vmem:[#allocation2 + $0x130] sm:$0xf]
    %v142 = vld [vmem:[#allocation2 + $0x134] sm:$0xf]
    %v143 = vld [vmem:[#allocation2 + $0x138] sm:$0xf]
    %v144 = vld [vmem:[#allocation2 + $0x13c] sm:$0xf]
    %v145 = vld [vmem:[#allocation2 + $0x140] sm:$0xf]
    %v146 = vld [vmem:[#allocation2 + $0x144] sm:$0xf]
    %v147 = vld [vmem:[#allocation2 + $0x148] sm:$0xf]
    %v148 = vld [vmem:[#allocation2 + $0x14c] sm:$0xf]
    %v149 = vld [vmem:[#allocation2 + $0x150] sm:$0xf]
    %v150 = vld [vmem:[#allocation2 + $0x154] sm:$0xf]
    %v151 = vld [vmem:[#allocation2 + $0x158] sm:$0xf]
    %v152 = vld [vmem:[#allocation2 + $0x15c] sm:$0xf]
    %v153 = vld [vmem:[#allocation2 + $0x160] sm:$0xf]
    %v154 = vld [vmem:[#allocation2 + $0x164] sm:$0xf]
    %v155 = vld [vmem:[#allocation2 + $0x168] sm:$0xf]
    %v156 = vld [vmem:[#allocation2 + $0x16c] sm:$0xf]
    %v157 = vld [vmem:[#allocation2 + $0x170] sm:$0xf]
    %v158 = vld [vmem:[#allocation2 + $0x174] sm:$0xf]
    %v159 = vld [vmem:[#allocation2 + $0x178] sm:$0xf]
    %v160 = vld [vmem:[#allocation2 + $0x17c] sm:$0xf]
    %v161 = vld [vmem:[#allocation2 + $0x180] sm:$0xf]
    %v162 = vld [vmem:[#allocation2 + $0x184] sm:$0xf]
    %v163 = vld [vmem:[%s2] sm:$0x1]
    %v165 = vperm.slane %v163, 0
    %v265 = vunpack.c.l.b16 %v65
    %v266 = vunpack.c.l.b16 %v66
    %v267 = vunpack.c.l.b16 %v67
    %v268 = vunpack.c.l.b16 %v68
    %v269 = vunpack.c.l.b16 %v69
    %v270 = vunpack.c.l.b16 %v70
    %v271 = vunpack.c.l.b16 %v71
    %v272 = vunpack.c.l.b16 %v72
    %v273 = vunpack.c.l.b16 %v73
    %v274 = vunpack.c.l.b16 %v74
    %v275 = vunpack.c.l.b16 %v75
    %v276 = vunpack.c.l.b16 %v76
    %v277 = vunpack.c.l.b16 %v77
    %v278 = vunpack.c.l.b16 %v78
    %v279 = vunpack.c.l.b16 %v79
    %v280 = vunpack.c.l.b16 %v80
    %v281 = vunpack.c.l.b16 %v81
    %v282 = vunpack.c.l.b16 %v82
    %v283 = vunpack.c.l.b16 %v83
    %v284 = vunpack.c.l.b16 %v84
    %v285 = vunpack.c.l.b16 %v85
    %v286 = vunpack.c.l.b16 %v86
    %v287 = vunpack.c.l.b16 %v87
    %v288 = vunpack.c.l.b16 %v88
    %v289 = vunpack.c.l.b16 %v89
    %v290 = vunpack.c.l.b16 %v90
    %v291 = vunpack.c.l.b16 %v91
    %v292 = vunpack.c.l.b16 %v92
    %v293 = vunpack.c.l.b16 %v93
    %v294 = vunpack.c.l.b16 %v94
    %v295 = vunpack.c.l.b16 %v95
    %v296 = vunpack.c.l.b16 %v96
    %v297 = vunpack.c.l.b16 %v97
    %v298 = vunpack.c.l.b16 %v98
    %v299 = vunpack.c.l.b16 %v99
    %v300 = vunpack.c.l.b16 %v100
    %v301 = vunpack.c.l.b16 %v101
    %v302 = vunpack.c.l.b16 %v102
    %v303 = vunpack.c.l.b16 %v103
    %v304 = vunpack.c.l.b16 %v104
    %v305 = vunpack.c.l.b16 %v105
    %v306 = vunpack.c.l.b16 %v106
    %v307 = vunpack.c.l.b16 %v107
    %v308 = vunpack.c.l.b16 %v108
    %v309 = vunpack.c.l.b16 %v109
    %v310 = vunpack.c.l.b16 %v110
    %v311 = vunpack.c.l.b16 %v111
    %v312 = vunpack.c.l.b16 %v112
    %v313 = vunpack.c.l.b16 %v113
    %v314 = vunpack.c.l.b16 %v114
    %v315 = vunpack.c.l.b16 %v115
    %v316 = vunpack.c.l.b16 %v116
    %v317 = vunpack.c.l.b16 %v117
    %v318 = vunpack.c.l.b16 %v118
    %v319 = vunpack.c.l.b16 %v119
    %v320 = vunpack.c.l.b16 %v120
    %v321 = vunpack.c.l.b16 %v121
    %v322 = vunpack.c.l.b16 %v122
    %v323 = vunpack.c.l.b16 %v123
    %v324 = vunpack.c.l.b16 %v124
    %v325 = vunpack.c.l.b16 %v125
    %v326 = vunpack.c.l.b16 %v126
    %v327 = vunpack.c.l.b16 %v127
    %v328 = vunpack.c.l.b16 %v128
    %v329 = vunpack.c.l.b16 %v129
    %v330 = vunpack.c.l.b16 %v130
    %v331 = vunpack.c.l.b16 %v131
    %v332 = vunpack.c.l.b16 %v132
    %v333 = vunpack.c.l.b16 %v133
    %v334 = vunpack.c.l.b16 %v134
    %v335 = vunpack.c.l.b16 %v135
    %v336 = vunpack.c.l.b16 %v136
    %v337 = vunpack.c.l.b16 %v137
    %v338 = vunpack.c.l.b16 %v138
    %v339 = vunpack.c.l.b16 %v139
    %v340 = vunpack.c.l.b16 %v140
    %v341 = vunpack.c.l.b16 %v141
    %v342 = vunpack.c.l.b16 %v142
    %v343 = vunpack.c.l.b16 %v143
    %v344 = vunpack.c.l.b16 %v144
    %v345 = vunpack.c.l.b16 %v145
    %v346 = vunpack.c.l.b16 %v146
    %v347 = vunpack.c.l.b16 %v147
    %v348 = vunpack.c.l.b16 %v148
    %v349 = vunpack.c.l.b16 %v149
    %v350 = vunpack.c.l.b16 %v150
    %v351 = vunpack.c.l.b16 %v151
    %v352 = vunpack.c.l.b16 %v152
    %v353 = vunpack.c.l.b16 %v153
    %v354 = vunpack.c.l.b16 %v154
    %v355 = vunpack.c.l.b16 %v155
    %v356 = vunpack.c.l.b16 %v156
    %v357 = vunpack.c.l.b16 %v157
    %v358 = vunpack.c.l.b16 %v158
    %v359 = vunpack.c.l.b16 %v159
    %v360 = vunpack.c.l.b16 %v160
    %v361 = vunpack.c.l.b16 %v161
    %v362 = vunpack.c.l.b16 %v162
    %v363 = vpack.c.b16 %v266, %v265
    %v364 = vpack.c.b16 %v268, %v267
    %v365 = vpack.c.b16 %v270, %v269
    %v366 = vpack.c.b16 %v272, %v271
    %v367 = vpack.c.b16 %v274, %v273
    %v368 = vpack.c.b16 %v276, %v275
    %v369 = vpack.c.b16 %v278, %v277
    %v370 = vpack.c.b16 %v280, %v279
    %v371 = vpack.c.b16 %v282, %v281
    %v372 = vpack.c.b16 %v284, %v283
    %v373 = vpack.c.b16 %v286, %v285
    %v374 = vpack.c.b16 %v288, %v287
    %v375 = vpack.c.b16 %v290, %v289
    %v376 = vpack.c.b16 %v292, %v291
    %v377 = vpack.c.b16 %v294, %v293
    %v378 = vpack.c.b16 %v296, %v295
    %v379 = vpack.c.b16 %v298, %v297
    %v380 = vpack.c.b16 %v300, %v299
    %v381 = vpack.c.b16 %v302, %v301
    %v382 = vpack.c.b16 %v304, %v303
    %v383 = vpack.c.b16 %v306, %v305
    %v384 = vpack.c.b16 %v308, %v307
    %v385 = vpack.c.b16 %v310, %v309
    %v386 = vpack.c.b16 %v312, %v311
    %v387 = vpack.c.b16 %v314, %v313
    %v388 = vpack.c.b16 %v316, %v315
    %v389 = vpack.c.b16 %v318, %v317
    %v390 = vpack.c.b16 %v320, %v319
    %v391 = vpack.c.b16 %v322, %v321
    %v392 = vpack.c.b16 %v324, %v323
    %v393 = vpack.c.b16 %v326, %v325
    %v394 = vpack.c.b16 %v328, %v327
    %v395 = vpack.c.b16 %v330, %v329
    %v396 = vpack.c.b16 %v332, %v331
    %v397 = vpack.c.b16 %v334, %v333
    %v398 = vpack.c.b16 %v336, %v335
    %v399 = vpack.c.b16 %v338, %v337
    %v400 = vpack.c.b16 %v340, %v339
    %v401 = vpack.c.b16 %v342, %v341
    %v402 = vpack.c.b16 %v344, %v343
    %v403 = vpack.c.b16 %v346, %v345
    %v404 = vpack.c.b16 %v348, %v347
    %v405 = vpack.c.b16 %v350, %v349
    %v406 = vpack.c.b16 %v352, %v351
    %v407 = vpack.c.b16 %v354, %v353
    %v408 = vpack.c.b16 %v356, %v355
    %v409 = vpack.c.b16 %v358, %v357
    %v410 = vpack.c.b16 %v360, %v359
    %v411 = vpack.c.b16 %v362, %v361
    %vm461 = vcmask 130048
    %v463 = vsel %vm461, %v64, 0
    %465 = vmatpush.bf16.msra.mxu0 %v370
    %466 = vmatpush.bf16.msra.mxu0 %v369
    %467 = vmatpush.bf16.msra.mxu0 %v368
    %468 = vmatpush.bf16.msra.mxu0 %v367
    %469 = vmatpush.bf16.msra.mxu0 %v366
    %470 = vmatpush.bf16.msra.mxu0 %v365
    %471 = vmatpush.bf16.msra.mxu0 %v364
    %472 = vmatpush.bf16.msra.mxu0 %v363
    %473 = vmatmul.bf16.gmra.mxu0 %v58
    %v474 = vpop.f32.mrf.mxu0
    %v475 = vadd.f32 %v165, %v474
    %v476 = vpop.f32.mrf.mxu0
    %477 = vdwg.mxu0
    %478 = vmatpush.bf16.msra.mxu0 %v378
    %479 = vmatpush.bf16.msra.mxu0 %v377
    %480 = vmatpush.bf16.msra.mxu0 %v376
    %481 = vmatpush.bf16.msra.mxu0 %v375
    %482 = vmatpush.bf16.msra.mxu0 %v374
    %483 = vmatpush.bf16.msra.mxu0 %v373
    %484 = vmatpush.bf16.msra.mxu0 %v372
    %485 = vmatpush.bf16.msra.mxu0 %v371
    %486 = vmatmul.bf16.gmra.mxu0 %v59
    %v487 = vpop.f32.mrf.mxu0
    %v488 = vadd.f32 %v475, %v487
    %v489 = vpop.f32.mrf.mxu0
    %490 = vdwg.mxu0
    %491 = vmatpush.bf16.msra.mxu0 %v386
    %492 = vmatpush.bf16.msra.mxu0 %v385
    %493 = vmatpush.bf16.msra.mxu0 %v384
    %494 = vmatpush.bf16.msra.mxu0 %v383
    %495 = vmatpush.bf16.msra.mxu0 %v382
    %496 = vmatpush.bf16.msra.mxu0 %v381
    %497 = vmatpush.bf16.msra.mxu0 %v380
    %498 = vmatpush.bf16.msra.mxu0 %v379
    %499 = vmatmul.bf16.gmra.mxu0 %v60
    %v500 = vpop.f32.mrf.mxu0
    %v501 = vadd.f32 %v488, %v500
    %v502 = vpop.f32.mrf.mxu0
    %503 = vdwg.mxu0
    %504 = vmatpush.bf16.msra.mxu0 %v394
    %505 = vmatpush.bf16.msra.mxu0 %v393
    %506 = vmatpush.bf16.msra.mxu0 %v392
    %507 = vmatpush.bf16.msra.mxu0 %v391
    %508 = vmatpush.bf16.msra.mxu0 %v390
    %509 = vmatpush.bf16.msra.mxu0 %v389
    %510 = vmatpush.bf16.msra.mxu0 %v388
    %511 = vmatpush.bf16.msra.mxu0 %v387
    %512 = vmatmul.bf16.gmra.mxu0 %v61
    %v513 = vpop.f32.mrf.mxu0
    %v514 = vadd.f32 %v501, %v513
    %v515 = vpop.f32.mrf.mxu0
    %516 = vdwg.mxu0
    %517 = vmatpush.bf16.msra.mxu0 %v402
    %518 = vmatpush.bf16.msra.mxu0 %v401
    %519 = vmatpush.bf16.msra.mxu0 %v400
    %520 = vmatpush.bf16.msra.mxu0 %v399
    %521 = vmatpush.bf16.msra.mxu0 %v398
    %522 = vmatpush.bf16.msra.mxu0 %v397
    %523 = vmatpush.bf16.msra.mxu0 %v396
    %524 = vmatpush.bf16.msra.mxu0 %v395
    %525 = vmatmul.bf16.gmra.mxu0 %v62
    %v526 = vpop.f32.mrf.mxu0
    %v527 = vadd.f32 %v514, %v526
    %v528 = vpop.f32.mrf.mxu0
    %529 = vdwg.mxu0
    %530 = vmatpush.bf16.msra.mxu0 %v410
    %531 = vmatpush.bf16.msra.mxu0 %v409
    %532 = vmatpush.bf16.msra.mxu0 %v408
    %533 = vmatpush.bf16.msra.mxu0 %v407
    %534 = vmatpush.bf16.msra.mxu0 %v406
    %535 = vmatpush.bf16.msra.mxu0 %v405
    %536 = vmatpush.bf16.msra.mxu0 %v404
    %537 = vmatpush.bf16.msra.mxu0 %v403
    %538 = vmatmul.bf16.gmra.mxu0 %v63
    %v539 = vpop.f32.mrf.mxu0
    %v540 = vadd.f32 %v527, %v539
    %v541 = vpop.f32.mrf.mxu0
    %542 = vdwg.mxu0
    %543 = vmatpush.bf16.msra.mxu0 0
    %544 = vmatpush.bf16.msra.mxu0 0
    %545 = vmatpush.bf16.msra.mxu0 0
    %546 = vmatpush.bf16.msra.mxu0 0
    %547 = vmatpush.bf16.msra.mxu0 0
    %548 = vmatpush.bf16.msra.mxu0 0
    %549 = vmatpush.bf16.msra.mxu0 0
    %550 = vmatpush.bf16.msra.mxu0 %v411
    %551 = vmatmul.bf16.gmra.mxu0 %v463
    %v552 = vpop.f32.mrf.mxu0
    %v553 = vadd.f32 %v540, %v552
    %v554 = vpop.f32.mrf.mxu0
    %555 = vdwg.mxu0
    %v556 = vmax.f32 %v553, 0.0
    %v557 = vpack.c.bf16 %v556, %v556
    %v558 = vld [vmem:[%s3] sm:$0xf]
    %v559 = vld [vmem:[%s3 + $0x4] sm:$0xf]
    %v560 = vld [vmem:[%s3 + $0x8] sm:$0xf]
    %v561 = vld [vmem:[%s3 + $0xc] sm:$0xf]
    %v562 = vld [vmem:[%s3 + $0x10] sm:$0xf]
    %v563 = vld [vmem:[%s3 + $0x14] sm:$0xf]
    %v564 = vld [vmem:[%s3 + $0x18] sm:$0xf]
    %v565 = vld [vmem:[%s3 + $0x1c] sm:$0xf]
    %v566 = vld [vmem:[%s3 + $0x20] sm:$0xf]
    %v567 = vld [vmem:[%s3 + $0x24] sm:$0xf]
    %v568 = vld [vmem:[%s3 + $0x28] sm:$0xf]
    %v569 = vld [vmem:[%s3 + $0x2c] sm:$0xf]
    %v570 = vld [vmem:[%s3 + $0x30] sm:$0xf]
    %v571 = vld [vmem:[%s3 + $0x34] sm:$0xf]
    %v572 = vld [vmem:[%s3 + $0x38] sm:$0xf]
    %v573 = vld [vmem:[%s3 + $0x3c] sm:$0xf]
    %v574 = vld [vmem:[%s4] sm:$0x1]
    %v576 = vperm.slane %v574, 0
    %v594 = vunpack.c.l.b16 %v558
    %v595 = vunpack.c.l.b16 %v559
    %v596 = vunpack.c.l.b16 %v560
    %v597 = vunpack.c.l.b16 %v561
    %v598 = vunpack.c.l.b16 %v562
    %v599 = vunpack.c.l.b16 %v563
    %v600 = vunpack.c.l.b16 %v564
    %v601 = vunpack.c.l.b16 %v565
    %v602 = vunpack.c.l.b16 %v566
    %v603 = vunpack.c.l.b16 %v567
    %v604 = vunpack.c.l.b16 %v568
    %v605 = vunpack.c.l.b16 %v569
    %v606 = vunpack.c.l.b16 %v570
    %v607 = vunpack.c.l.b16 %v571
    %v608 = vunpack.c.l.b16 %v572
    %v609 = vunpack.c.l.b16 %v573
    %v610 = vpack.c.b16 %v595, %v594
    %v611 = vpack.c.b16 %v597, %v596
    %v612 = vpack.c.b16 %v599, %v598
    %v613 = vpack.c.b16 %v601, %v600
    %v614 = vpack.c.b16 %v603, %v602
    %v615 = vpack.c.b16 %v605, %v604
    %v616 = vpack.c.b16 %v607, %v606
    %v617 = vpack.c.b16 %v609, %v608
    %626 = vmatpush.bf16.msra.mxu0 %v617
    %627 = vmatpush.bf16.msra.mxu0 %v616
    %628 = vmatpush.bf16.msra.mxu0 %v615
    %629 = vmatpush.bf16.msra.mxu0 %v614
    %630 = vmatpush.bf16.msra.mxu0 %v613
    %631 = vmatpush.bf16.msra.mxu0 %v612
    %632 = vmatpush.bf16.msra.mxu0 %v611
    %633 = vmatpush.bf16.msra.mxu0 %v610
    %634 = vmatmul.bf16.gmra.mxu0 %v557
    %v635 = vpop.f32.mrf.mxu0
    %v636 = vadd.f32 %v576, %v635
    %v637 = vpop.f32.mrf.mxu0
    %638 = vdwg.mxu0
    %v639 = vpack.c.bf16 %v636, %v636
    %640 = vst [vmem:[%s5] sm:$0x1] %v639
    // Predicated region
    $region26: #{baseline_b_forward.1} parent=1 // pred_check
      _
    $region27: #{baseline_b_forward.1} parent=1 // pred_check_branch
      %642 = sbr.rel (0) target = $region29
    $region28: #{baseline_b_forward.1} parent=1 // pred_region
      _
    $region29: #{baseline_b_forward.1} parent=1 // pred_fallthru
      _
    // Predicated region
    $region30: #{baseline_b_forward.1} parent=1 // pred_check
      _
    $region31: #{baseline_b_forward.1} parent=1 // pred_check_branch
      %644 = sbr.rel (0) target = $region33
    $region32: #{baseline_b_forward.1} parent=1 // pred_region
      _
    $region33: #{baseline_b_forward.1} parent=1 // pred_fallthru
      _
    %645 = vsyncpa [#allocation3], 1

</llo_original>
